<compile_context>
chip_gen: v5e
topology: v5e:2x2
jax: 0.10.0
libtpu: 0.0.40
codegen_flags: <defaults>
</compile_context>

<pallas_src>
import jax
import jax.numpy as jnp
import numpy as np
from jax.experimental import pallas as pl
from jax.experimental.pallas import tpu as pltpu


def _rnn_fused_kernel(x_ref, w1t_ref, w2t_ref, b2_ref, h0_ref, out_ref, u_ref):
    """Whole-sequence forward in one invocation (everything lives in VMEM).

    Refs:
      x_ref  : ((L-1)*B, dimx)  f32 -- inputs, time-major rows (row = t*B + b)
      w1t_ref: (dimx, latent)   f32 -- W1^T
      w2t_ref: (latent, latent) f32 -- W2^T
      b2_ref : (1, latent)      f32 -- l2 bias
      h0_ref : (B, latent)      f32 -- initial hidden state
      out_ref: (L, B, latent)   f32 -- res, time-major (== torch.stack(res, 0))
      u_ref  : ((L-1)*B, latent) f32 VMEM scratch -- hoisted input projection
    """
    B, latent = h0_ref.shape
    n_steps = x_ref.shape[0] // B           # L - 1, static at trace time

    # [opt 1] Hoisted, non-recurrent input projection: ONE dense MXU matmul for
    # all timesteps, off the serial critical path.  u stays in VMEM only.
    u_ref[...] = (
        jnp.dot(x_ref[...], w1t_ref[...], preferred_element_type=jnp.float32)
        + b2_ref[...]
    )

    w2t = w2t_ref[...]                       # loop-invariant weight, loaded once
    h = h0_ref[...]
    hs = [h]                                 # res[0] = h_0

    # Serial recurrence, statically unrolled (L is small and static).  For long
    # sequences: time-chunk via a grid axis marked "arbitrary", carry h in VMEM
    # scratch across chunks, and use lax.fori_loop with a bounded unroll (4-8).
    for s in range(n_steps):
        u_t = u_ref[s * B:(s + 1) * B, :]    # cheap static VMEM slice load
        h = jnp.tanh(u_t + jnp.dot(h, w2t, preferred_element_type=jnp.float32))
        hs.append(h)

    # [opt 2] Single slab store of all hidden states -- no per-step masked
    # stores interleaved with the serial MXU+tanh chain.
    out_ref[...] = jnp.stack(hs, axis=0).astype(out_ref.dtype)


@jax.jit
def rnn_forward(x, w1, w2, b2, h0=None):
    """x : (batch, length, dimx) float32 (PyTorch layout).

    w1 : (latent, dimx)   -- l1.weight (no bias)
    w2 : (latent, latent) -- l2.weight
    b2 : (latent,)        -- l2.bias
    Returns (length, batch, latent) float32, identical to the PyTorch forward.
    """
    B, L, dimx = x.shape
    latent = w1.shape[0]

    x = x.astype(jnp.float32)
    w1 = w1.astype(jnp.float32)
    w2 = w2.astype(jnp.float32)
    b2 = b2.astype(jnp.float32)
    h0 = jnp.zeros((B, latent), jnp.float32) if h0 is None else h0.astype(jnp.float32)

    if L == 1:                               # forward() would just return [h_0]
        return h0[None]

    # [opt 1] Only x (dimx-wide) crosses the XLA/kernel boundary; the latent-wide
    # u tensor is never materialized in HBM.  Time-major layout so the kernel's
    # hoisted projection output can be sliced per step with plain row offsets.
    x_tm = jnp.transpose(x[:, : L - 1, :], (1, 0, 2)).reshape((L - 1) * B, dimx)
    w1t = w1.T                               # (dimx, latent)
    w2t = w2.T                               # (latent, latent)
    b2r = b2.reshape(1, latent)

    # Single grid step: the whole sequence fits trivially in VMEM; weights are
    # DMA'd once; output is written back as one block DMA.
    out = pl.pallas_call(
        _rnn_fused_kernel,
        out_shape=jax.ShapeDtypeStruct((L, B, latent), jnp.float32),
        grid=(1,),
        in_specs=[
            pl.BlockSpec(((L - 1) * B, dimx), lambda i: (0, 0)),
            pl.BlockSpec((dimx, latent), lambda i: (0, 0)),
            pl.BlockSpec((latent, latent), lambda i: (0, 0)),
            pl.BlockSpec((1, latent), lambda i: (0, 0)),
            pl.BlockSpec((B, latent), lambda i: (0, 0)),
        ],
        out_specs=pl.BlockSpec((L, B, latent), lambda i: (0, 0, 0)),
        scratch_shapes=[pltpu.VMEM(((L - 1) * B, latent), jnp.float32)],
        compiler_params=pltpu.CompilerParams(
            dimension_semantics=("arbitrary",),
        ),
    )(x_tm, w1t, w2t, b2r, h0)
    return out


def rnn_forward_ref(x, w1, w2, b2, h0=None):
    """Pure-JAX reference mirroring the PyTorch loop."""
    B, L, _ = x.shape
    latent = w1.shape[0]
    h = jnp.zeros((B, latent), jnp.float32) if h0 is None else h0
    res = [h]
    for i in range(1, L):
        x_t = x[:, i - 1, :]
        h = jnp.tanh(x_t @ w1.T + res[i - 1] @ w2.T + b2)
        res.append(h)
    return jnp.stack(res, axis=0)


if __name__ == "__main__":
    # Small shapes consistent with the module.
    batch, length, dimx, dim_latent, dim_output = 2, 8, 4, 32, 5

    key = jax.random.PRNGKey(0)
    kx, k1, k2, kb = jax.random.split(key, 4)

    x = jax.random.normal(kx, (batch, length, dimx), dtype=jnp.float32)

    # Deterministic parameter init (uniform, roughly nn.Linear's default scale).
    w1 = jax.random.uniform(k1, (dim_latent, dimx), jnp.float32,
                            minval=-1.0 / np.sqrt(dimx), maxval=1.0 / np.sqrt(dimx))
    w2 = jax.random.uniform(k2, (dim_latent, dim_latent), jnp.float32,
                            minval=-1.0 / np.sqrt(dim_latent), maxval=1.0 / np.sqrt(dim_latent))
    b2 = jax.random.uniform(kb, (dim_latent,), jnp.float32,
                            minval=-1.0 / np.sqrt(dim_latent), maxval=1.0 / np.sqrt(dim_latent))
    # TODO(synk): l_decode / decode() (latent -> dim_output) is not used by forward(); not kernelized.

    out = rnn_forward(x, w1, w2, b2)
    out = jax.block_until_ready(out)

    ref = rnn_forward_ref(x, w1, w2, b2)
    assert out.shape == (length, batch, dim_latent), out.shape
    np.testing.assert_allclose(np.asarray(out), np.asarray(ref), rtol=1e-5, atol=1e-5)

    print("KERNEL_OK")
</pallas_src>

<mosaic_0001>
module attributes {stable_mosaic.version = 11 : i64} {
  func.func @_rnn_fused_kernel(%arg0: i32, %arg1: memref<14x4xf32, #tpu.memory_space<vmem>>, %arg2: memref<4x32xf32, #tpu.memory_space<vmem>>, %arg3: memref<32x32xf32, #tpu.memory_space<vmem>>, %arg4: memref<1x32xf32, #tpu.memory_space<vmem>>, %arg5: memref<2x32xf32, #tpu.memory_space<vmem>>, %arg6: memref<8x2x32xf32, #tpu.memory_space<vmem>>, %arg7: memref<14x32xf32, #tpu.memory_space<vmem>>) attributes {dimension_semantics = [#tpu.dimension_semantics<arbitrary>], iteration_bounds = array<i64: 1>, scalar_prefetch = 0 : i64, scratch_operands = 1 : i64, tpu.core_type = #tpu.core_type<tc>, window_params = [{pipeline_mode = #tpu.pipeline_mode<synchronous>, transform_indices = @transform_0, window_bounds = array<i64: 14, 4>}, {pipeline_mode = #tpu.pipeline_mode<synchronous>, transform_indices = @transform_1, window_bounds = array<i64: 4, 32>}, {pipeline_mode = #tpu.pipeline_mode<synchronous>, transform_indices = @transform_2, window_bounds = array<i64: 32, 32>}, {pipeline_mode = #tpu.pipeline_mode<synchronous>, transform_indices = @transform_3, window_bounds = array<i64: 1, 32>}, {pipeline_mode = #tpu.pipeline_mode<synchronous>, transform_indices = @transform_4, window_bounds = array<i64: 2, 32>}, {pipeline_mode = #tpu.pipeline_mode<synchronous>, transform_indices = @transform_5, window_bounds = array<i64: 8, 2, 32>}]} {
    %c0 = arith.constant 0 : index
    %c0_0 = arith.constant 0 : index
    %0 = vector.load %arg1[%c0, %c0_0] : memref<14x4xf32, #tpu.memory_space<vmem>>, vector<14x4xf32>
    %c0_1 = arith.constant 0 : index
    %c0_2 = arith.constant 0 : index
    %1 = vector.load %arg2[%c0_1, %c0_2] : memref<4x32xf32, #tpu.memory_space<vmem>>, vector<4x32xf32>
    %cst = arith.constant dense<0.000000e+00> : vector<14x32xf32>
    %2 = tpu.matmul %0, %1, %cst {dimension_numbers = #tpu.dot_dimension_numbers<[1], [0], [0], [1], [0, 0, 1, 1], [], []>} : vector<14x4xf32>, vector<4x32xf32>, vector<14x32xf32> -> vector<14x32xf32>
    %c0_3 = arith.constant 0 : index
    %c0_4 = arith.constant 0 : index
    %3 = vector.load %arg4[%c0_3, %c0_4] : memref<1x32xf32, #tpu.memory_space<vmem>>, vector<1x32xf32>
    %4 = vector.broadcast %3 : vector<1x32xf32> to vector<14x32xf32>
    %5 = arith.addf %2, %4 : vector<14x32xf32>
    %c0_5 = arith.constant 0 : index
    %c0_6 = arith.constant 0 : index
    %6 = vector.load %arg7[%c0_5, %c0_6] : memref<14x32xf32, #tpu.memory_space<vmem>>, vector<14x32xf32>
    tpu.vector_store %arg7[%c0_5, %c0_6], %5 {strides = array<i32>} : memref<14x32xf32, #tpu.memory_space<vmem>>, vector<14x32xf32>,
    %c0_7 = arith.constant 0 : index
    %c0_8 = arith.constant 0 : index
    %7 = vector.load %arg3[%c0_7, %c0_8] : memref<32x32xf32, #tpu.memory_space<vmem>>, vector<32x32xf32>
    %c0_9 = arith.constant 0 : index
    %c0_10 = arith.constant 0 : index
    %8 = vector.load %arg5[%c0_9, %c0_10] : memref<2x32xf32, #tpu.memory_space<vmem>>, vector<2x32xf32>
    %c0_11 = arith.constant 0 : index
    %c0_12 = arith.constant 0 : index
    %9 = vector.load %arg7[%c0_11, %c0_12] : memref<14x32xf32, #tpu.memory_space<vmem>>, vector<2x32xf32>
    %cst_13 = arith.constant dense<0.000000e+00> : vector<2x32xf32>
    %10 = tpu.matmul %8, %7, %cst_13 {dimension_numbers = #tpu.dot_dimension_numbers<[1], [0], [0], [1], [0, 0, 1, 1], [], []>} : vector<2x32xf32>, vector<32x32xf32>, vector<2x32xf32> -> vector<2x32xf32>
    %11 = arith.addf %9, %10 : vector<2x32xf32>
    %12 = math.tanh %11 : vector<2x32xf32>
    %c2 = arith.constant 2 : index
    %c0_14 = arith.constant 0 : index
    %13 = vector.load %arg7[%c2, %c0_14] : memref<14x32xf32, #tpu.memory_space<vmem>>, vector<2x32xf32>
    %cst_15 = arith.constant dense<0.000000e+00> : vector<2x32xf32>
    %14 = tpu.matmul %12, %7, %cst_15 {dimension_numbers = #tpu.dot_dimension_numbers<[1], [0], [0], [1], [0, 0, 1, 1], [], []>} : vector<2x32xf32>, vector<32x32xf32>, vector<2x32xf32> -> vector<2x32xf32>
    %15 = arith.addf %13, %14 : vector<2x32xf32>
    %16 = math.tanh %15 : vector<2x32xf32>
    %c4 = arith.constant 4 : index
    %c0_16 = arith.constant 0 : index
    %17 = vector.load %arg7[%c4, %c0_16] : memref<14x32xf32, #tpu.memory_space<vmem>>, vector<2x32xf32>
    %cst_17 = arith.constant dense<0.000000e+00> : vector<2x32xf32>
    %18 = tpu.matmul %16, %7, %cst_17 {dimension_numbers = #tpu.dot_dimension_numbers<[1], [0], [0], [1], [0, 0, 1, 1], [], []>} : vector<2x32xf32>, vector<32x32xf32>, vector<2x32xf32> -> vector<2x32xf32>
    %19 = arith.addf %17, %18 : vector<2x32xf32>
    %20 = math.tanh %19 : vector<2x32xf32>
    %c6 = arith.constant 6 : index
    %c0_18 = arith.constant 0 : index
    %21 = vector.load %arg7[%c6, %c0_18] : memref<14x32xf32, #tpu.memory_space<vmem>>, vector<2x32xf32>
    %cst_19 = arith.constant dense<0.000000e+00> : vector<2x32xf32>
    %22 = tpu.matmul %20, %7, %cst_19 {dimension_numbers = #tpu.dot_dimension_numbers<[1], [0], [0], [1], [0, 0, 1, 1], [], []>} : vector<2x32xf32>, vector<32x32xf32>, vector<2x32xf32> -> vector<2x32xf32>
    %23 = arith.addf %21, %22 : vector<2x32xf32>
    %24 = math.tanh %23 : vector<2x32xf32>
    %c8 = arith.constant 8 : index
    %c0_20 = arith.constant 0 : index
    %25 = vector.load %arg7[%c8, %c0_20] : memref<14x32xf32, #tpu.memory_space<vmem>>, vector<2x32xf32>
    %cst_21 = arith.constant dense<0.000000e+00> : vector<2x32xf32>
    %26 = tpu.matmul %24, %7, %cst_21 {dimension_numbers = #tpu.dot_dimension_numbers<[1], [0], [0], [1], [0, 0, 1, 1], [], []>} : vector<2x32xf32>, vector<32x32xf32>, vector<2x32xf32> -> vector<2x32xf32>
    %27 = arith.addf %25, %26 : vector<2x32xf32>
    %28 = math.tanh %27 : vector<2x32xf32>
    %c10 = arith.constant 10 : index
    %c0_22 = arith.constant 0 : index
    %29 = vector.load %arg7[%c10, %c0_22] : memref<14x32xf32, #tpu.memory_space<vmem>>, vector<2x32xf32>
    %cst_23 = arith.constant dense<0.000000e+00> : vector<2x32xf32>
    %30 = tpu.matmul %28, %7, %cst_23 {dimension_numbers = #tpu.dot_dimension_numbers<[1], [0], [0], [1], [0, 0, 1, 1], [], []>} : vector<2x32xf32>, vector<32x32xf32>, vector<2x32xf32> -> vector<2x32xf32>
    %31 = arith.addf %29, %30 : vector<2x32xf32>
    %32 = math.tanh %31 : vector<2x32xf32>
    %c12 = arith.constant 12 : index
    %c0_24 = arith.constant 0 : index
    %33 = vector.load %arg7[%c12, %c0_24] : memref<14x32xf32, #tpu.memory_space<vmem>>, vector<2x32xf32>
    %cst_25 = arith.constant dense<0.000000e+00> : vector<2x32xf32>
    %34 = tpu.matmul %32, %7, %cst_25 {dimension_numbers = #tpu.dot_dimension_numbers<[1], [0], [0], [1], [0, 0, 1, 1], [], []>} : vector<2x32xf32>, vector<32x32xf32>, vector<2x32xf32> -> vector<2x32xf32>
    %35 = arith.addf %33, %34 : vector<2x32xf32>
    %36 = math.tanh %35 : vector<2x32xf32>
    %37 = vector.shape_cast %8 : vector<2x32xf32> to vector<1x2x32xf32>
    %38 = vector.shape_cast %12 : vector<2x32xf32> to vector<1x2x32xf32>
    %39 = vector.shape_cast %16 : vector<2x32xf32> to vector<1x2x32xf32>
    %40 = vector.shape_cast %20 : vector<2x32xf32> to vector<1x2x32xf32>
    %41 = vector.shape_cast %24 : vector<2x32xf32> to vector<1x2x32xf32>
    %42 = vector.shape_cast %28 : vector<2x32xf32> to vector<1x2x32xf32>
    %43 = vector.shape_cast %32 : vector<2x32xf32> to vector<1x2x32xf32>
    %44 = vector.shape_cast %36 : vector<2x32xf32> to vector<1x2x32xf32>
    %45 = tpu.concatenate %37, %38, %39, %40, %41, %42, %43, %44 in 0 : vector<1x2x32xf32>, vector<1x2x32xf32>, vector<1x2x32xf32>, vector<1x2x32xf32>, vector<1x2x32xf32>, vector<1x2x32xf32>, vector<1x2x32xf32>, vector<1x2x32xf32> -> vector<8x2x32xf32>
    %c0_26 = arith.constant 0 : index
    %c0_27 = arith.constant 0 : index
    %c0_28 = arith.constant 0 : index
    %46 = vector.load %arg6[%c0_26, %c0_27, %c0_28] : memref<8x2x32xf32, #tpu.memory_space<vmem>>, vector<8x2x32xf32>
    tpu.vector_store %arg6[%c0_26, %c0_27, %c0_28], %45 {strides = array<i32>} : memref<8x2x32xf32, #tpu.memory_space<vmem>>, vector<8x2x32xf32>,
    return
  }
  func.func @transform_0(%arg0: i32) -> (i32, i32) {
    %c0_i32 = arith.constant 0 : i32
    %c0_i32_0 = arith.constant 0 : i32
    %c0_i32_1 = arith.constant 0 : i32
    return %c0_i32, %c0_i32_0 : i32, i32
  }
  func.func @transform_1(%arg0: i32) -> (i32, i32) {
    %c0_i32 = arith.constant 0 : i32
    %c0_i32_0 = arith.constant 0 : i32
    %c0_i32_1 = arith.constant 0 : i32
    return %c0_i32, %c0_i32_0 : i32, i32
  }
  func.func @transform_2(%arg0: i32) -> (i32, i32) {
    %c0_i32 = arith.constant 0 : i32
    %c0_i32_0 = arith.constant 0 : i32
    %c0_i32_1 = arith.constant 0 : i32
    return %c0_i32, %c0_i32_0 : i32, i32
  }
  func.func @transform_3(%arg0: i32) -> (i32, i32) {
    %c0_i32 = arith.constant 0 : i32
    %c0_i32_0 = arith.constant 0 : i32
    %c0_i32_1 = arith.constant 0 : i32
    return %c0_i32, %c0_i32_0 : i32, i32
  }
  func.func @transform_4(%arg0: i32) -> (i32, i32) {
    %c0_i32 = arith.constant 0 : i32
    %c0_i32_0 = arith.constant 0 : i32
    %c0_i32_1 = arith.constant 0 : i32
    return %c0_i32, %c0_i32_0 : i32, i32
  }
  func.func @transform_5(%arg0: i32) -> (i32, i32, i32) {
    %c0_i32 = arith.constant 0 : i32
    %c0_i32_0 = arith.constant 0 : i32
    %c0_i32_1 = arith.constant 0 : i32
    %c0_i32_2 = arith.constant 0 : i32
    return %c0_i32, %c0_i32_0, %c0_i32_1 : i32, i32, i32
  }
}

</mosaic_0001>

<llo_original>
// kernel: rnn_forward.1
$region0: #{rnn_forward.1}
  #allocation0 [shape = 'u32[]', space=smem, size = 0x4, offset = 0x4, fixed_abs, tag = 'smem constant byte address 0x4 - core index']
  #allocation1 [shape = 'u32[72,128]{1,0:T(1,128)}', space=vmem, size = 0x9000, scoped, tag = 'internal scratch']
  #allocation2 [shape = 'f32[14,32]{1,0:T(8,128)}', space=vmem, size = 0x2000, scoped, tag = 'scratch operand']
  %s0 = inlined_call_operand.vmem [shape: f32[14,4], index: 0, kind: input, shape index: {}]
  %s1 = inlined_call_operand.vmem [shape: f32[4,32], index: 1, kind: input, shape index: {}]
  %s2 = inlined_call_operand.vmem [shape: f32[32,32], index: 2, kind: input, shape index: {}]
  %s3 = inlined_call_operand.vmem [shape: f32[1,32], index: 3, kind: input, shape index: {}]
  %s4 = inlined_call_operand.vmem [shape: f32[2,32], index: 4, kind: input, shape index: {}]
  %s5 = inlined_call_operand.hbm [shape: f32[8,2,32], index: 5, kind: output, shape index: {}]
  %s6 = sld [smem:[#allocation0]]
  $region30: #{rnn_forward.1} parent=0
    _
  %s8 = ssub.s32 1, %s6
  %s9 = scalar_select 0, %s8, %s6
  $region1: #{rnn_forward.1} parent=0
    #allocation3 [shape = 'u8[8192]{0}', space=vmem, size = 0x2000, scoped, tag = 'output window, operand 0, single buffered']
    #allocation4 [shape = 's32[1]{0}', space=sflag, size = 0x4, scoped, tag = 'scoped memory for rnn_forward.1']
    %10 = vsyncpa [#allocation4], 0
    // Predicated region
    $region2: #{rnn_forward.1} parent=1 // pred_check
      _
    $region3: #{rnn_forward.1} parent=1 // pred_check_branch
      %12 = sbr.rel (0) target = $region5
    $region4: #{rnn_forward.1} parent=1 // pred_region
      _
    $region5: #{rnn_forward.1} parent=1 // pred_fallthru
      _
    // Predicated region
    $region6: #{rnn_forward.1} parent=1 // pred_check
      _
    $region7: #{rnn_forward.1} parent=1 // pred_check_branch
      %14 = sbr.rel (0) target = $region9
    $region8: #{rnn_forward.1} parent=1 // pred_region
      _
    $region9: #{rnn_forward.1} parent=1 // pred_fallthru
      _
    // Predicated region
    $region10: #{rnn_forward.1} parent=1 // pred_check
      _
    $region11: #{rnn_forward.1} parent=1 // pred_check_branch
      %16 = sbr.rel (0) target = $region13
    $region12: #{rnn_forward.1} parent=1 // pred_region
      _
    $region13: #{rnn_forward.1} parent=1 // pred_fallthru
      _
    // Predicated region
    $region14: #{rnn_forward.1} parent=1 // pred_check
      _
    $region15: #{rnn_forward.1} parent=1 // pred_check_branch
      %18 = sbr.rel (0) target = $region17
    $region16: #{rnn_forward.1} parent=1 // pred_region
      _
    $region17: #{rnn_forward.1} parent=1 // pred_fallthru
      _
    // Predicated region
    $region18: #{rnn_forward.1} parent=1 // pred_check
      _
    $region19: #{rnn_forward.1} parent=1 // pred_check_branch
      %20 = sbr.rel (0) target = $region21
    $region20: #{rnn_forward.1} parent=1 // pred_region
      _
    $region21: #{rnn_forward.1} parent=1 // pred_fallthru
      _
    %v21 = vld [vmem:[%s0] sm:$0xff]
    %v22 = vld [vmem:[%s0 + $0x8] sm:$0x3f]
    %v23 = vld [vmem:[%s1] sm:$0xf]
    %v24 = vld [vmem:[%s3] sm:$0x1]
    %v26 = vperm.slane %v24, 0
    %vm28 = vcmask 31744
    %v30 = vsel %vm28, %v21, 0
    %v33 = vsel %vm28, %v22, 0
    %vm35 = vcmask 1043456
    %v37 = vsel %vm35, %v23, 0
    %39 = vmatpush.msra.mxu0 0.0
    %40 = vmatpush.msra.mxu0 0.0
    %41 = vmatpush.msra.mxu0 0.0
    %42 = vmatpush.msra.mxu0 0.0
    %43 = vmatpush.msra.mxu0 0.0
    %44 = vmatpush.msra.mxu0 0.0
    %45 = vmatpush.msra.mxu0 0.0
    %46 = vmatpush.msra.mxu0 0.0
    %47 = vmatpush.msra.mxu0 0.0
    %48 = vmatpush.msra.mxu0 0.0
    %49 = vmatpush.msra.mxu0 0.0
    %50 = vmatpush.msra.mxu0 0.0
    %51 = vmatpush.msra.mxu0 0.0
    %52 = vmatpush.msra.mxu0 0.0
    %53 = vmatpush.msra.mxu0 0.0
    %54 = vmatpush.msra.mxu0 %v37
    %55 = vmatmul.f32.gmra.mxu0 %v30
    %v56 = vpop.f32.mrf.mxu0
    %v57 = vadd.f32 %v26, %v56
    %58 = vmatmul.f32.gmra.mxu0 %v33
    %v59 = vpop.f32.mrf.mxu0
    %v60 = vadd.f32 %v26, %v59
    %61 = vdwg.mxu0
    %vm62 = vcmask 261120
    %63 = vst.msk [vmem:[#allocation2] sm:$0xff] %vm62, %v57
    %vm64 = vcmask 259072
    %65 = vst.msk [vmem:[#allocation2 + $0x8] sm:$0x3f] %vm64, %v60
    %v66 = vld [vmem:[%s2] sm:$0xff]
    %v67 = vld [vmem:[%s2 + $0x8] sm:$0xff]
    %v68 = vld [vmem:[%s2 + $0x10] sm:$0xff]
    %v69 = vld [vmem:[%s2 + $0x18] sm:$0xff]
    %v70 = vld [vmem:[%s4] sm:$0x3]
    %v71 = vld [vmem:[#allocation2] sm:$0x3]
    %v73 = vsel %vm62, %v70, 0
    %75 = vmatpush.msra.mxu0 0.0
    %76 = vmatpush.msra.mxu0 0.0
    %77 = vmatpush.msra.mxu0 0.0
    %78 = vmatpush.msra.mxu0 0.0
    %79 = vmatpush.msra.mxu0 0.0
    %80 = vmatpush.msra.mxu0 0.0
    %81 = vmatpush.msra.mxu0 0.0
    %82 = vmatpush.msra.mxu0 0.0
    %83 = vmatpush.msra.mxu0 0.0
    %84 = vmatpush.msra.mxu0 0.0
    %85 = vmatpush.msra.mxu0 0.0
    %86 = vmatpush.msra.mxu0 0.0
    %87 = vmatpush.msra.mxu0 %v69
    %88 = vmatpush.msra.mxu0 %v68
    %89 = vmatpush.msra.mxu0 %v67
    %90 = vmatpush.msra.mxu0 %v66
    %91 = vmatmul.f32.gmra.mxu0 %v73
    %v92 = vpop.f32.mrf.mxu0
    %v93 = vadd.f32 0.0, %v92
    %94 = vdwg.mxu0
    %v95 = vadd.f32 %v71, %v93
    %v96 = vtanh.pop %v95
    %v97 = vld [vmem:[#allocation2 + $0x2] sm:$0x3]
    %v99 = vsel %vm62, %v96, 0
    %101 = vmatpush.msra.mxu0 0.0
    %102 = vmatpush.msra.mxu0 0.0
    %103 = vmatpush.msra.mxu0 0.0
    %104 = vmatpush.msra.mxu0 0.0
    %105 = vmatpush.msra.mxu0 0.0
    %106 = vmatpush.msra.mxu0 0.0
    %107 = vmatpush.msra.mxu0 0.0
    %108 = vmatpush.msra.mxu0 0.0
    %109 = vmatpush.msra.mxu0 0.0
    %110 = vmatpush.msra.mxu0 0.0
    %111 = vmatpush.msra.mxu0 0.0
    %112 = vmatpush.msra.mxu0 0.0
    %113 = vmatpush.msra.mxu0 %v69
    %114 = vmatpush.msra.mxu0 %v68
    %115 = vmatpush.msra.mxu0 %v67
    %116 = vmatpush.msra.mxu0 %v66
    %117 = vmatmul.f32.gmra.mxu0 %v99
    %v118 = vpop.f32.mrf.mxu0
    %v119 = vadd.f32 0.0, %v118
    %120 = vdwg.mxu0
    %v121 = vadd.f32 %v97, %v119
    %v122 = vtanh.pop %v121
    %v123 = vld [vmem:[#allocation2 + $0x4] sm:$0x3]
    %v125 = vsel %vm62, %v122, 0
    %127 = vmatpush.msra.mxu0 0.0
    %128 = vmatpush.msra.mxu0 0.0
    %129 = vmatpush.msra.mxu0 0.0
    %130 = vmatpush.msra.mxu0 0.0
    %131 = vmatpush.msra.mxu0 0.0
    %132 = vmatpush.msra.mxu0 0.0
    %133 = vmatpush.msra.mxu0 0.0
    %134 = vmatpush.msra.mxu0 0.0
    %135 = vmatpush.msra.mxu0 0.0
    %136 = vmatpush.msra.mxu0 0.0
    %137 = vmatpush.msra.mxu0 0.0
    %138 = vmatpush.msra.mxu0 0.0
    %139 = vmatpush.msra.mxu0 %v69
    %140 = vmatpush.msra.mxu0 %v68
    %141 = vmatpush.msra.mxu0 %v67
    %142 = vmatpush.msra.mxu0 %v66
    %143 = vmatmul.f32.gmra.mxu0 %v125
    %v144 = vpop.f32.mrf.mxu0
    %v145 = vadd.f32 0.0, %v144
    %146 = vdwg.mxu0
    %v147 = vadd.f32 %v123, %v145
    %v148 = vtanh.pop %v147
    %v149 = vld [vmem:[#allocation2 + $0x6] sm:$0x3]
    %v151 = vsel %vm62, %v148, 0
    %153 = vmatpush.msra.mxu0 0.0
    %154 = vmatpush.msra.mxu0 0.0
    %155 = vmatpush.msra.mxu0 0.0
    %156 = vmatpush.msra.mxu0 0.0
    %157 = vmatpush.msra.mxu0 0.0
    %158 = vmatpush.msra.mxu0 0.0
    %159 = vmatpush.msra.mxu0 0.0
    %160 = vmatpush.msra.mxu0 0.0
    %161 = vmatpush.msra.mxu0 0.0
    %162 = vmatpush.msra.mxu0 0.0
    %163 = vmatpush.msra.mxu0 0.0
    %164 = vmatpush.msra.mxu0 0.0
    %165 = vmatpush.msra.mxu0 %v69
    %166 = vmatpush.msra.mxu0 %v68
    %167 = vmatpush.msra.mxu0 %v67
    %168 = vmatpush.msra.mxu0 %v66
    %169 = vmatmul.f32.gmra.mxu0 %v151
    %v170 = vpop.f32.mrf.mxu0
    %v171 = vadd.f32 0.0, %v170
    %172 = vdwg.mxu0
    %v173 = vadd.f32 %v149, %v171
    %v174 = vtanh.pop %v173
    %v175 = vld [vmem:[#allocation2 + $0x8] sm:$0x3]
    %v177 = vsel %vm62, %v174, 0
    %179 = vmatpush.msra.mxu0 0.0
    %180 = vmatpush.msra.mxu0 0.0
    %181 = vmatpush.msra.mxu0 0.0
    %182 = vmatpush.msra.mxu0 0.0
    %183 = vmatpush.msra.mxu0 0.0
    %184 = vmatpush.msra.mxu0 0.0
    %185 = vmatpush.msra.mxu0 0.0
    %186 = vmatpush.msra.mxu0 0.0
    %187 = vmatpush.msra.mxu0 0.0
    %188 = vmatpush.msra.mxu0 0.0
    %189 = vmatpush.msra.mxu0 0.0
    %190 = vmatpush.msra.mxu0 0.0
    %191 = vmatpush.msra.mxu0 %v69
    %192 = vmatpush.msra.mxu0 %v68
    %193 = vmatpush.msra.mxu0 %v67
    %194 = vmatpush.msra.mxu0 %v66
    %195 = vmatmul.f32.gmra.mxu0 %v177
    %v196 = vpop.f32.mrf.mxu0
    %v197 = vadd.f32 0.0, %v196
    %198 = vdwg.mxu0
    %v199 = vadd.f32 %v175, %v197
    %v200 = vtanh.pop %v199
    %v201 = vld [vmem:[#allocation2 + $0xa] sm:$0x3]
    %v203 = vsel %vm62, %v200, 0
    %205 = vmatpush.msra.mxu0 0.0
    %206 = vmatpush.msra.mxu0 0.0
    %207 = vmatpush.msra.mxu0 0.0
    %208 = vmatpush.msra.mxu0 0.0
    %209 = vmatpush.msra.mxu0 0.0
    %210 = vmatpush.msra.mxu0 0.0
    %211 = vmatpush.msra.mxu0 0.0
    %212 = vmatpush.msra.mxu0 0.0
    %213 = vmatpush.msra.mxu0 0.0
    %214 = vmatpush.msra.mxu0 0.0
    %215 = vmatpush.msra.mxu0 0.0
    %216 = vmatpush.msra.mxu0 0.0
    %217 = vmatpush.msra.mxu0 %v69
    %218 = vmatpush.msra.mxu0 %v68
    %219 = vmatpush.msra.mxu0 %v67
    %220 = vmatpush.msra.mxu0 %v66
    %221 = vmatmul.f32.gmra.mxu0 %v203
    %v222 = vpop.f32.mrf.mxu0
    %v223 = vadd.f32 0.0, %v222
    %224 = vdwg.mxu0
    %v225 = vadd.f32 %v201, %v223
    %v226 = vtanh.pop %v225
    %v227 = vld [vmem:[#allocation2 + $0xc] sm:$0x3]
    %v229 = vsel %vm62, %v226, 0
    %231 = vmatpush.msra.mxu0 0.0
    %232 = vmatpush.msra.mxu0 0.0
    %233 = vmatpush.msra.mxu0 0.0
    %234 = vmatpush.msra.mxu0 0.0
    %235 = vmatpush.msra.mxu0 0.0
    %236 = vmatpush.msra.mxu0 0.0
    %237 = vmatpush.msra.mxu0 0.0
    %238 = vmatpush.msra.mxu0 0.0
    %239 = vmatpush.msra.mxu0 0.0
    %240 = vmatpush.msra.mxu0 0.0
    %241 = vmatpush.msra.mxu0 0.0
    %242 = vmatpush.msra.mxu0 0.0
    %243 = vmatpush.msra.mxu0 %v69
    %244 = vmatpush.msra.mxu0 %v68
    %245 = vmatpush.msra.mxu0 %v67
    %246 = vmatpush.msra.mxu0 %v66
    %247 = vmatmul.f32.gmra.mxu0 %v229
    %v248 = vpop.f32.mrf.mxu0
    %v249 = vadd.f32 0.0, %v248
    %250 = vdwg.mxu0
    %v251 = vadd.f32 %v227, %v249
    %v252 = vtanh.pop %v251
    %vm253 = vcmask 254976
    %254 = vst.msk [vmem:[#allocation3] sm:$0x3] %vm253, %v70
    %255 = vst.msk [vmem:[#allocation3 + $0x2] sm:$0x3] %vm253, %v96
    %256 = vst.msk [vmem:[#allocation3 + $0x4] sm:$0x3] %vm253, %v122
    %257 = vst.msk [vmem:[#allocation3 + $0x6] sm:$0x3] %vm253, %v148
    %258 = vst.msk [vmem:[#allocation3 + $0x8] sm:$0x3] %vm253, %v174
    %259 = vst.msk [vmem:[#allocation3 + $0xa] sm:$0x3] %vm253, %v200
    %260 = vst.msk [vmem:[#allocation3 + $0xc] sm:$0x3] %vm253, %v226
    %261 = vst.msk [vmem:[#allocation3 + $0xe] sm:$0x3] %vm253, %v252
    // Predicated region
    $region22: #{rnn_forward.1} parent=1 // pred_check
      _
    $region23: #{rnn_forward.1} parent=1 // pred_check_branch
      %263 = sbr.rel (0) target = $region25
    $region24: #{rnn_forward.1} parent=1 // pred_region
      %265 = vsyncadd [#allocation4], 0
      %s266 = sshll.u32 [#allocation3], 4
      %s267 = int_to_ptr.vmem [resolvable:$true] %s266
      %s268 = sshll.u32 %s5, 4
      %s269 = int_to_ptr.hbm [resolvable:$true] %s268
      %274 = dma.vmem_to_hbm [thread:$0]  %s267, 256, %s269, [#allocation4], 32, 32, 2
    $region25: #{rnn_forward.1} parent=1 // pred_fallthru
      _
    // Predicated region
    $region26: #{rnn_forward.1} parent=1 // pred_check
      _
    $region27: #{rnn_forward.1} parent=1 // pred_check_branch
      %276 = sbr.rel (0) target = $region29
    $region28: #{rnn_forward.1} parent=1 // pred_region
      %278 = dma.done [#allocation4], 256
    $region29: #{rnn_forward.1} parent=1 // pred_fallthru
      _
    %279 = vsyncpa [#allocation4], 1

</llo_original>
